<compile_context>
chip_gen: v5e
topology: v5e:2x2
jax: 0.10.0
libtpu: 0.0.40
codegen_flags: <defaults>
</compile_context>

<pallas_src>
import functools

import numpy as np
import jax
import jax.numpy as jnp
from jax.experimental import pallas as pl
from jax.experimental.pallas import tpu as pltpu

GRID_SIZE = 5
SPLINE_ORDER = 3
GRID_RANGE = (-1.0, 1.0)
NUM_BASES = GRID_SIZE + SPLINE_ORDER            # 8 order-3 spline bases per input feature
BN_EPS = 1e-5


def _round_up(a, b):
    return (a + b - 1) // b * b


def _knots():
    """Knot positions of the (shared) KAN grid, as trace-time Python floats."""
    h = (GRID_RANGE[1] - GRID_RANGE[0]) / GRID_SIZE
    return [float(i) * h + GRID_RANGE[0]
            for i in range(-SPLINE_ORDER, GRID_SIZE + SPLINE_ORDER + 1)]   # 12 knots


def _spline_consts(d):
    """Per-lane constant table for the lane-packed Cox-de Boor recursion.

    Packed layout: lane l = j*d + dd holds slot-j quantities evaluated at input
    feature dd.  Rows of the returned (15, width) table:
      0, 1                 : order-0 knot interval [t_j, t_{j+1})
      2+4(k-1) .. 5+4(k-1) : t_j, 1/(t_{j+k}-t_j), t_{j+k+1}, 1/(t_{j+k+1}-t_{j+1})  (level k)
      14                   : 0/1 mask selecting the SiLU slot (slot NUM_BASES)
    Invalid / padding slots get zero coefficients, so they stay exactly 0.
    """
    knots = _knots()
    nk = len(knots)                      # 12
    ns = nk - 1                          # 11 order-0 bases == packed slots
    width = _round_up(ns * d, 128)       # lane-dense packed width (multiple of 128)

    def slot_vec(per_slot):
        v = np.repeat(np.asarray(per_slot, np.float32), d)
        return np.pad(v, (0, width - ns * d))

    rows = [slot_vec([knots[j] for j in range(ns)]),
            slot_vec([knots[j + 1] for j in range(ns)])]
    for k in range(1, SPLINE_ORDER + 1):
        t1 = [0.0] * ns
        c1 = [0.0] * ns
        t2 = [0.0] * ns
        c2 = [0.0] * ns
        for j in range(ns):
            if j + k + 1 < nk:           # slot j is a valid level-k basis
                t1[j] = knots[j]
                c1[j] = 1.0 / (knots[j + k] - knots[j])
                t2[j] = knots[j + k + 1]
                c2[j] = 1.0 / (knots[j + k + 1] - knots[j + 1])
        rows += [slot_vec(t1), slot_vec(c1), slot_vec(t2), slot_vec(c2)]
    silu_mask = [0.0] * ns
    silu_mask[NUM_BASES] = 1.0
    rows.append(slot_vec(silu_mask))
    return np.stack(rows).astype(np.float32), width


def encoder_kernel(d, width, xt_ref, c_ref, w_ref, gamma_ref, beta_ref, o_ref):
    """Fused KANLinear + BatchNorm1d forward (single grid point).

    xt_ref:    (B, width)   x tiled along lanes into every basis slot
    c_ref:     (15, width)  per-lane spline constants (see _spline_consts)
    w_ref:     (width, O)   packed weights: [spline 0..NB-1 | SiLU/base | zero pad]
    gamma_ref: (1, O)       BN scale
    beta_ref:  (1, O)       BN shift
    o_ref:     (B, O)       output
    """
    xt = xt_ref[...]

    # ---- order-0 bases: 1.0 on [t_j, t_{j+1}), all 11 slots at once -----------
    b = jnp.where((xt >= c_ref[0:1, :]) & (xt < c_ref[1:2, :]), 1.0, 0.0)
    b = b.astype(jnp.float32)

    # ---- Cox-de Boor recursion, lane-packed ------------------------------------
    # Each level: a handful of full-width VPU ops + one XLU roll that aligns
    # slot j+1 with slot j (jnp.roll semantics: nbr[:, l] == b[:, l + d]).
    for k in range(1, SPLINE_ORDER + 1):
        r = 2 + 4 * (k - 1)
        t1 = c_ref[r + 0:r + 1, :]
        c1 = c_ref[r + 1:r + 2, :]
        t2 = c_ref[r + 2:r + 3, :]
        c2 = c_ref[r + 3:r + 4, :]
        nbr = pltpu.roll(b, shift=width - d, axis=1)
        b = (xt - t1) * c1 * b + (t2 - xt) * c2 * nbr

    # ---- drop SiLU(x) into its dedicated slot so KANLinear is one matmul -------
    silu = xt * jax.nn.sigmoid(xt)
    m = c_ref[2 + 4 * SPLINE_ORDER:3 + 4 * SPLINE_ORDER, :]
    a = jnp.where(m == 1.0, silu, b)

    # ---- single MXU call: K = width (fills contraction depth) ------------------
    # TODO(synk): on v6e/v7x, casting `a` and the weights to bfloat16 (keeping
    # f32 accumulation) doubles MXU rate; kept f32 here for exact reference match.
    y = jnp.dot(a, w_ref[...], preferred_element_type=jnp.float32)

    # ---- BatchNorm1d (training mode: batch stats, biased variance) -------------
    mean = jnp.mean(y, axis=0, keepdims=True)
    var = jnp.mean((y - mean) ** 2, axis=0, keepdims=True)
    o_ref[...] = (y - mean) * jax.lax.rsqrt(var + BN_EPS) * gamma_ref[...] + beta_ref[...]


def pack_encoder_params(base_weight, spline_weight, spline_scaler, gamma, beta):
    """One-time parameter repacking; keep this out of the per-call path.

    base_weight: (O, D); spline_weight: (O, D, NB); spline_scaler: (O, D).
    Returns (w_packed (width, O), consts (15, width), gamma (1, O), beta (1, O)).
    """
    o, d = base_weight.shape
    consts_np, width = _spline_consts(d)
    scaled = spline_weight * spline_scaler[:, :, None]                   # (O, D, NB)
    sw = jnp.transpose(scaled, (2, 1, 0)).reshape(NUM_BASES * d, o)      # row j*d+dd = scaled[o, dd, j]
    w_packed = jnp.concatenate(
        [sw,                                                             # spline path rows
         jnp.transpose(base_weight),                                     # SiLU / base path rows
         jnp.zeros((width - (NUM_BASES + 1) * d, o), jnp.float32)],      # lane padding rows
        axis=0)                                                          # (width, O)
    return w_packed, jnp.asarray(consts_np), gamma.reshape(1, o), beta.reshape(1, o)


@jax.jit
def encoder_forward(x, w_packed, consts, gamma2, beta2):
    b, d = x.shape
    width = consts.shape[1]
    o = w_packed.shape[1]

    # Layout plumbing: tile x into every basis slot (lane-packed activation).
    reps = -(-width // d)
    xt = jnp.tile(x, (1, reps))[:, :width]

    kernel = functools.partial(encoder_kernel, d, width)
    vmem = pl.BlockSpec(memory_space=pltpu.MemorySpace.VMEM)

    # Single grid point: the whole problem is a few KiB and BatchNorm needs
    # full-batch statistics.  When scaling, tile only the output-feature axis
    # (grid over O with dimension_semantics=("parallel",)) so BN stats stay
    # exact and both v7x TensorCores are used; keep the output lane width a
    # multiple of 128 for unmasked stores.
    return pl.pallas_call(
        kernel,
        out_shape=jax.ShapeDtypeStruct((b, o), jnp.float32),
        in_specs=[vmem] * 5,
        out_specs=vmem,
    )(xt, consts, w_packed, gamma2, beta2)


def encoder_reference(x, base_weight, spline_weight, spline_scaler, gamma, beta):
    """Pure-JAX mirror of the PyTorch forward (for correctness checking)."""
    knots = jnp.array(_knots(), dtype=jnp.float32)
    xb = x[:, :, None]
    bases = ((xb >= knots[:-1]) & (xb < knots[1:])).astype(x.dtype)
    for k in range(1, SPLINE_ORDER + 1):
        bases = (
            (xb - knots[: -(k + 1)]) / (knots[k:-1] - knots[: -(k + 1)]) * bases[:, :, :-1]
            + (knots[k + 1:] - xb) / (knots[k + 1:] - knots[1:-k]) * bases[:, :, 1:]
        )
    base_out = (x * jax.nn.sigmoid(x)) @ base_weight.T
    scaled = spline_weight * spline_scaler[:, :, None]
    spline_out = bases.reshape(x.shape[0], -1) @ scaled.reshape(base_weight.shape[0], -1).T
    y = base_out + spline_out
    mean = y.mean(axis=0, keepdims=True)
    var = ((y - mean) ** 2).mean(axis=0, keepdims=True)
    return (y - mean) / jnp.sqrt(var + BN_EPS) * gamma + beta


if __name__ == "__main__":
    B, IN_SHAPE, LAYER1 = 8, 16, 32   # batch, in_shape, layer1

    key = jax.random.PRNGKey(0)
    kx, kb, ks, kc = jax.random.split(key, 4)

    x = jax.random.normal(kx, (B, IN_SHAPE), dtype=jnp.float32)

    # Deterministic synthetic parameter init (kaiming-uniform-ish scales).
    bound_b = (6.0 / IN_SHAPE) ** 0.5
    base_weight = jax.random.uniform(
        kb, (LAYER1, IN_SHAPE), jnp.float32, -bound_b, bound_b)
    spline_weight = 0.1 * jax.random.normal(
        ks, (LAYER1, IN_SHAPE, NUM_BASES), dtype=jnp.float32)
    spline_scaler = jax.random.uniform(
        kc, (LAYER1, IN_SHAPE), jnp.float32, -bound_b, bound_b)
    gamma = jnp.ones((LAYER1,), jnp.float32)   # BN weight
    beta = jnp.zeros((LAYER1,), jnp.float32)   # BN bias

    # One-time weight packing (outside the per-call path).
    w_packed, consts, gamma2, beta2 = pack_encoder_params(
        base_weight, spline_weight, spline_scaler, gamma, beta)

    out = encoder_forward(x, w_packed, consts, gamma2, beta2)
    out = jax.block_until_ready(out)

    ref = encoder_reference(x, base_weight, spline_weight, spline_scaler, gamma, beta)
    assert out.shape == (B, LAYER1)
    max_err = float(jnp.max(jnp.abs(out - ref)))
    assert jnp.allclose(out, ref, atol=2e-3, rtol=2e-3), max_err

    print("KERNEL_OK")
</pallas_src>

<mosaic_0001>
module attributes {stable_mosaic.version = 11 : i64} {
  func.func @encoder_kernel(%arg0: memref<8x256xf32, #tpu.memory_space<vmem>>, %arg1: memref<15x256xf32, #tpu.memory_space<vmem>>, %arg2: memref<256x32xf32, #tpu.memory_space<vmem>>, %arg3: memref<1x32xf32, #tpu.memory_space<vmem>>, %arg4: memref<1x32xf32, #tpu.memory_space<vmem>>, %arg5: memref<8x32xf32, #tpu.memory_space<vmem>>) attributes {dimension_semantics = [], scalar_prefetch = 0 : i64, scratch_operands = 0 : i64, tpu.core_type = #tpu.core_type<tc>} {
    %c0 = arith.constant 0 : index
    %c0_0 = arith.constant 0 : index
    %0 = vector.load %arg0[%c0, %c0_0] : memref<8x256xf32, #tpu.memory_space<vmem>>, vector<8x256xf32>
    %c0_1 = arith.constant 0 : index
    %c0_2 = arith.constant 0 : index
    %1 = vector.load %arg1[%c0_1, %c0_2] : memref<15x256xf32, #tpu.memory_space<vmem>>, vector<1x256xf32>
    %2 = vector.broadcast %1 : vector<1x256xf32> to vector<8x256xf32>
    %3 = arith.cmpf oge, %0, %2 : vector<8x256xf32>
    %c1 = arith.constant 1 : index
    %c0_3 = arith.constant 0 : index
    %4 = vector.load %arg1[%c1, %c0_3] : memref<15x256xf32, #tpu.memory_space<vmem>>, vector<1x256xf32>
    %5 = vector.broadcast %4 : vector<1x256xf32> to vector<8x256xf32>
    %6 = arith.cmpf olt, %0, %5 : vector<8x256xf32>
    %7 = arith.andi %3, %6 : vector<8x256xi1>
    %cst = arith.constant 1.000000e+00 : f32
    %cst_4 = arith.constant 0.000000e+00 : f32
    %8 = vector.broadcast %cst : f32 to vector<8x256xf32>
    %9 = vector.broadcast %cst_4 : f32 to vector<8x256xf32>
    %10 = arith.select %7, %8, %9 : vector<8x256xi1>, vector<8x256xf32>
    %c2 = arith.constant 2 : index
    %c0_5 = arith.constant 0 : index
    %11 = vector.load %arg1[%c2, %c0_5] : memref<15x256xf32, #tpu.memory_space<vmem>>, vector<1x256xf32>
    %c3 = arith.constant 3 : index
    %c0_6 = arith.constant 0 : index
    %12 = vector.load %arg1[%c3, %c0_6] : memref<15x256xf32, #tpu.memory_space<vmem>>, vector<1x256xf32>
    %c4 = arith.constant 4 : index
    %c0_7 = arith.constant 0 : index
    %13 = vector.load %arg1[%c4, %c0_7] : memref<15x256xf32, #tpu.memory_space<vmem>>, vector<1x256xf32>
    %c5 = arith.constant 5 : index
    %c0_8 = arith.constant 0 : index
    %14 = vector.load %arg1[%c5, %c0_8] : memref<15x256xf32, #tpu.memory_space<vmem>>, vector<1x256xf32>
    %c240_i32 = arith.constant 240 : i32
    %15 = tpu.dynamic_rotate %10 by %c240_i32 dim 1 : vector<8x256xf32>, i32 -> vector<8x256xf32>
    %16 = vector.broadcast %11 : vector<1x256xf32> to vector<8x256xf32>
    %17 = arith.subf %0, %16 : vector<8x256xf32>
    %18 = vector.broadcast %12 : vector<1x256xf32> to vector<8x256xf32>
    %19 = arith.mulf %17, %18 : vector<8x256xf32>
    %20 = arith.mulf %19, %10 : vector<8x256xf32>
    %21 = vector.broadcast %13 : vector<1x256xf32> to vector<8x256xf32>
    %22 = arith.subf %21, %0 : vector<8x256xf32>
    %23 = vector.broadcast %14 : vector<1x256xf32> to vector<8x256xf32>
    %24 = arith.mulf %22, %23 : vector<8x256xf32>
    %25 = arith.mulf %24, %15 : vector<8x256xf32>
    %26 = arith.addf %20, %25 : vector<8x256xf32>
    %c6 = arith.constant 6 : index
    %c0_9 = arith.constant 0 : index
    %27 = vector.load %arg1[%c6, %c0_9] : memref<15x256xf32, #tpu.memory_space<vmem>>, vector<1x256xf32>
    %c7 = arith.constant 7 : index
    %c0_10 = arith.constant 0 : index
    %28 = vector.load %arg1[%c7, %c0_10] : memref<15x256xf32, #tpu.memory_space<vmem>>, vector<1x256xf32>
    %c8 = arith.constant 8 : index
    %c0_11 = arith.constant 0 : index
    %29 = vector.load %arg1[%c8, %c0_11] : memref<15x256xf32, #tpu.memory_space<vmem>>, vector<1x256xf32>
    %c9 = arith.constant 9 : index
    %c0_12 = arith.constant 0 : index
    %30 = vector.load %arg1[%c9, %c0_12] : memref<15x256xf32, #tpu.memory_space<vmem>>, vector<1x256xf32>
    %c240_i32_13 = arith.constant 240 : i32
    %31 = tpu.dynamic_rotate %26 by %c240_i32_13 dim 1 : vector<8x256xf32>, i32 -> vector<8x256xf32>
    %32 = vector.broadcast %27 : vector<1x256xf32> to vector<8x256xf32>
    %33 = arith.subf %0, %32 : vector<8x256xf32>
    %34 = vector.broadcast %28 : vector<1x256xf32> to vector<8x256xf32>
    %35 = arith.mulf %33, %34 : vector<8x256xf32>
    %36 = arith.mulf %35, %26 : vector<8x256xf32>
    %37 = vector.broadcast %29 : vector<1x256xf32> to vector<8x256xf32>
    %38 = arith.subf %37, %0 : vector<8x256xf32>
    %39 = vector.broadcast %30 : vector<1x256xf32> to vector<8x256xf32>
    %40 = arith.mulf %38, %39 : vector<8x256xf32>
    %41 = arith.mulf %40, %31 : vector<8x256xf32>
    %42 = arith.addf %36, %41 : vector<8x256xf32>
    %c10 = arith.constant 10 : index
    %c0_14 = arith.constant 0 : index
    %43 = vector.load %arg1[%c10, %c0_14] : memref<15x256xf32, #tpu.memory_space<vmem>>, vector<1x256xf32>
    %c11 = arith.constant 11 : index
    %c0_15 = arith.constant 0 : index
    %44 = vector.load %arg1[%c11, %c0_15] : memref<15x256xf32, #tpu.memory_space<vmem>>, vector<1x256xf32>
    %c12 = arith.constant 12 : index
    %c0_16 = arith.constant 0 : index
    %45 = vector.load %arg1[%c12, %c0_16] : memref<15x256xf32, #tpu.memory_space<vmem>>, vector<1x256xf32>
    %c13 = arith.constant 13 : index
    %c0_17 = arith.constant 0 : index
    %46 = vector.load %arg1[%c13, %c0_17] : memref<15x256xf32, #tpu.memory_space<vmem>>, vector<1x256xf32>
    %c240_i32_18 = arith.constant 240 : i32
    %47 = tpu.dynamic_rotate %42 by %c240_i32_18 dim 1 : vector<8x256xf32>, i32 -> vector<8x256xf32>
    %48 = vector.broadcast %43 : vector<1x256xf32> to vector<8x256xf32>
    %49 = arith.subf %0, %48 : vector<8x256xf32>
    %50 = vector.broadcast %44 : vector<1x256xf32> to vector<8x256xf32>
    %51 = arith.mulf %49, %50 : vector<8x256xf32>
    %52 = arith.mulf %51, %42 : vector<8x256xf32>
    %53 = vector.broadcast %45 : vector<1x256xf32> to vector<8x256xf32>
    %54 = arith.subf %53, %0 : vector<8x256xf32>
    %55 = vector.broadcast %46 : vector<1x256xf32> to vector<8x256xf32>
    %56 = arith.mulf %54, %55 : vector<8x256xf32>
    %57 = arith.mulf %56, %47 : vector<8x256xf32>
    %58 = arith.addf %52, %57 : vector<8x256xf32>
    %59 = arith.negf %0 : vector<8x256xf32>
    %60 = math.exp %59 : vector<8x256xf32>
    %cst_19 = arith.constant 1.000000e+00 : f32
    %61 = vector.broadcast %cst_19 : f32 to vector<8x256xf32>
    %62 = arith.addf %61, %60 : vector<8x256xf32>
    %63 = arith.divf %61, %62 : vector<8x256xf32>
    %64 = arith.mulf %0, %63 : vector<8x256xf32>
    %c14 = arith.constant 14 : index
    %c0_20 = arith.constant 0 : index
    %65 = vector.load %arg1[%c14, %c0_20] : memref<15x256xf32, #tpu.memory_space<vmem>>, vector<1x256xf32>
    %cst_21 = arith.constant 1.000000e+00 : f32
    %66 = vector.broadcast %cst_21 : f32 to vector<1x256xf32>
    %67 = arith.cmpf oeq, %65, %66 : vector<1x256xf32>
    %68 = vector.shape_cast %67 : vector<1x256xi1> to vector<1x256xi1>
    %69 = vector.broadcast %68 : vector<1x256xi1> to vector<8x256xi1>
    %70 = arith.select %69, %64, %58 : vector<8x256xi1>, vector<8x256xf32>
    %c0_22 = arith.constant 0 : index
    %c0_23 = arith.constant 0 : index
    %71 = vector.load %arg2[%c0_22, %c0_23] : memref<256x32xf32, #tpu.memory_space<vmem>>, vector<256x32xf32>
    %cst_24 = arith.constant dense<0.000000e+00> : vector<8x32xf32>
    %72 = tpu.matmul %70, %71, %cst_24 {dimension_numbers = #tpu.dot_dimension_numbers<[1], [0], [0], [1], [0, 0, 1, 1], [], []>} : vector<8x256xf32>, vector<256x32xf32>, vector<8x32xf32> -> vector<8x32xf32>
    %cst_25 = arith.constant dense<0.000000e+00> : vector<32xf32>
    %73 = vector.multi_reduction <add>, %72, %cst_25 [0] : vector<8x32xf32> to vector<32xf32>
    %74 = vector.shape_cast %73 : vector<32xf32> to vector<1x32xf32>
    %cst_26 = arith.constant 8.000000e+00 : f32
    %75 = vector.broadcast %cst_26 : f32 to vector<1x32xf32>
    %76 = arith.divf %74, %75 : vector<1x32xf32>
    %77 = vector.broadcast %76 : vector<1x32xf32> to vector<8x32xf32>
    %78 = arith.subf %72, %77 : vector<8x32xf32>
    %79 = arith.mulf %78, %78 : vector<8x32xf32>
    %cst_27 = arith.constant dense<0.000000e+00> : vector<32xf32>
    %80 = vector.multi_reduction <add>, %79, %cst_27 [0] : vector<8x32xf32> to vector<32xf32>
    %81 = vector.shape_cast %80 : vector<32xf32> to vector<1x32xf32>
    %cst_28 = arith.constant 8.000000e+00 : f32
    %82 = vector.broadcast %cst_28 : f32 to vector<1x32xf32>
    %83 = arith.divf %81, %82 : vector<1x32xf32>
    %84 = vector.broadcast %76 : vector<1x32xf32> to vector<8x32xf32>
    %85 = arith.subf %72, %84 : vector<8x32xf32>
    %cst_29 = arith.constant 9.99999974E-6 : f32
    %86 = vector.broadcast %cst_29 : f32 to vector<1x32xf32>
    %87 = arith.addf %83, %86 : vector<1x32xf32>
    %88 = math.rsqrt %87 : vector<1x32xf32>
    %89 = vector.broadcast %88 : vector<1x32xf32> to vector<8x32xf32>
    %90 = arith.mulf %85, %89 : vector<8x32xf32>
    %c0_30 = arith.constant 0 : index
    %c0_31 = arith.constant 0 : index
    %91 = vector.load %arg3[%c0_30, %c0_31] : memref<1x32xf32, #tpu.memory_space<vmem>>, vector<1x32xf32>
    %92 = vector.broadcast %91 : vector<1x32xf32> to vector<8x32xf32>
    %93 = arith.mulf %90, %92 : vector<8x32xf32>
    %c0_32 = arith.constant 0 : index
    %c0_33 = arith.constant 0 : index
    %94 = vector.load %arg4[%c0_32, %c0_33] : memref<1x32xf32, #tpu.memory_space<vmem>>, vector<1x32xf32>
    %95 = vector.broadcast %94 : vector<1x32xf32> to vector<8x32xf32>
    %96 = arith.addf %93, %95 : vector<8x32xf32>
    %c0_34 = arith.constant 0 : index
    %c0_35 = arith.constant 0 : index
    %97 = vector.load %arg5[%c0_34, %c0_35] : memref<8x32xf32, #tpu.memory_space<vmem>>, vector<8x32xf32>
    tpu.vector_store %arg5[%c0_34, %c0_35], %96 {strides = array<i32>} : memref<8x32xf32, #tpu.memory_space<vmem>>, vector<8x32xf32>,
    return
  }
}

</mosaic_0001>

<llo_original>
// kernel: tile.9
$region0: #{tile.9}
  %s0 = inlined_call_operand.vmem [shape: f32[8,16,16], index: 0, kind: input, shape index: {}]
  %s1 = inlined_call_operand.vmem [shape: f32[8,256], index: 1, kind: output, shape index: {}]
  %v2 = vld [vmem:[%s0] ss:$8 sm:$0xf]
  %v3 = vld [vmem:[%s0] ss:$8 sm:$0xf0]
  %vm4 = vcmask 1047556
  %v5 = vsel %vm4, %v3, %v2
  %vm6 = vcmask 130048
  %7 = vst.msk [vmem:[%s1] ss:$8 sm:$0x3] %vm6, %v5
  %s8 = scalar_lea.vmem %s1, 4294967281
  %9 = vst.msk [vmem:[%s8] ss:$8 sm:$0xc] %vm6, %v5
  %s10 = scalar_lea.vmem %s1, 4294967266
  %11 = vst.msk [vmem:[%s10] ss:$8 sm:$0x30] %vm6, %v5
  %s12 = scalar_lea.vmem %s1, 4294967251
  %13 = vst.msk [vmem:[%s12] ss:$8 sm:$0xc0] %vm6, %v5
  %s14 = scalar_lea.vmem %s0, 64
  %v15 = vld [vmem:[%s14] ss:$8 sm:$0xf]
  %s16 = scalar_lea.vmem %s0, 64
  %v17 = vld [vmem:[%s16] ss:$8 sm:$0xf0]
  %vm18 = vcmask 1047556
  %v19 = vsel %vm18, %v17, %v15
  %vm20 = vcmask 130048
  %s21 = scalar_lea.vmem %s1, 4
  %22 = vst.msk [vmem:[%s21] ss:$8 sm:$0x3] %vm20, %v19
  %s23 = scalar_lea.vmem %s1, 4294967285
  %24 = vst.msk [vmem:[%s23] ss:$8 sm:$0xc] %vm20, %v19
  %s25 = scalar_lea.vmem %s1, 4294967270
  %26 = vst.msk [vmem:[%s25] ss:$8 sm:$0x30] %vm20, %v19
  %s27 = scalar_lea.vmem %s1, 4294967255
  %28 = vst.msk [vmem:[%s27] ss:$8 sm:$0xc0] %vm20, %v19
  %s29 = scalar_lea.vmem %s0, 7
  %s30 = smov 3
  %v31 = vld [vmem:[%s29] ss:$16 sm:%s30]
  %s32 = scalar_lea.vmem %s0, 7
  %s33 = smov 12
  %v34 = vld [vmem:[%s32] ss:$16 sm:%s33]
  %vm35 = vcmask 1043458
  %v36 = vsel %vm35, %v34, %v31
  %s37 = scalar_lea.vmem %s0, 7
  %s38 = smov 48
  %v39 = vld [vmem:[%s37] ss:$16 sm:%s38]
  %vm40 = vcmask 1045508
  %v41 = vsel %vm40, %v39, %v36
  %s42 = scalar_lea.vmem %s0, 7
  %s43 = smov 192
  %v44 = vld [vmem:[%s42] ss:$16 sm:%s43]
  %vm45 = vcmask 1047558
  %v46 = vsel %vm45, %v44, %v41
  %47 = vrot.lane.b32.xlu0 %v46, 112
  %v48 = vpop.permute.xlu0 %47
  %vm49 = vcmask 1048448
  %50 = vst.msk [vmem:[%s1] sm:$0xff] %vm49, %v48
  %s51 = scalar_lea.vmem %s0, 15
  %s52 = smov 3
  %v53 = vld [vmem:[%s51] ss:$16 sm:%s52]
  %s54 = scalar_lea.vmem %s0, 15
  %s55 = smov 12
  %v56 = vld [vmem:[%s54] ss:$16 sm:%s55]
  %vm57 = vcmask 1043458
  %v58 = vsel %vm57, %v56, %v53
  %s59 = scalar_lea.vmem %s0, 15
  %s60 = smov 48
  %v61 = vld [vmem:[%s59] ss:$16 sm:%s60]
  %vm62 = vcmask 1045508
  %v63 = vsel %vm62, %v61, %v58
  %s64 = scalar_lea.vmem %s0, 15
  %s65 = smov 192
  %v66 = vld [vmem:[%s64] ss:$16 sm:%s65]
  %vm67 = vcmask 1047558
  %v68 = vsel %vm67, %v66, %v63
  %69 = vrot.lane.b32.xlu0 %v68, 112
  %v70 = vpop.permute.xlu0 %69
  %vm71 = vcmask 1048448
  %s72 = scalar_lea.vmem %s1, 8
  %73 = vst.msk [vmem:[%s72] sm:$0xff] %vm71, %v70
  %s74 = scalar_lea.vmem %s0, 6
  %s75 = smov 3
  %v76 = vld [vmem:[%s74] ss:$16 sm:%s75]
  %s77 = scalar_lea.vmem %s0, 6
  %s78 = smov 12
  %v79 = vld [vmem:[%s77] ss:$16 sm:%s78]
  %vm80 = vcmask 1043458
  %v81 = vsel %vm80, %v79, %v76
  %s82 = scalar_lea.vmem %s0, 6
  %s83 = smov 48
  %v84 = vld [vmem:[%s82] ss:$16 sm:%s83]
  %vm85 = vcmask 1045508
  %v86 = vsel %vm85, %v84, %v81
  %s87 = scalar_lea.vmem %s0, 6
  %s88 = smov 192
  %v89 = vld [vmem:[%s87] ss:$16 sm:%s88]
  %vm90 = vcmask 1047558
  %v91 = vsel %vm90, %v89, %v86
  %92 = vrot.lane.b32.xlu0 %v91, 96
  %v93 = vpop.permute.xlu0 %92
  %vm94 = vcmask 917248
  %95 = vst.msk [vmem:[%s1] sm:$0xff] %vm94, %v93
  %s96 = scalar_lea.vmem %s0, 14
  %s97 = smov 3
  %v98 = vld [vmem:[%s96] ss:$16 sm:%s97]
  %s99 = scalar_lea.vmem %s0, 14
  %s100 = smov 12
  %v101 = vld [vmem:[%s99] ss:$16 sm:%s100]
  %vm102 = vcmask 1043458
  %v103 = vsel %vm102, %v101, %v98
  %s104 = scalar_lea.vmem %s0, 14
  %s105 = smov 48
  %v106 = vld [vmem:[%s104] ss:$16 sm:%s105]
  %vm107 = vcmask 1045508
  %v108 = vsel %vm107, %v106, %v103
  %s109 = scalar_lea.vmem %s0, 14
  %s110 = smov 192
  %v111 = vld [vmem:[%s109] ss:$16 sm:%s110]
  %vm112 = vcmask 1047558
  %v113 = vsel %vm112, %v111, %v108
  %114 = vrot.lane.b32.xlu0 %v113, 96
  %v115 = vpop.permute.xlu0 %114
  %vm116 = vcmask 917248
  %s117 = scalar_lea.vmem %s1, 8
  %118 = vst.msk [vmem:[%s117] sm:$0xff] %vm116, %v115
  %s119 = scalar_lea.vmem %s0, 5
  %s120 = smov 3
  %v121 = vld [vmem:[%s119] ss:$16 sm:%s120]
  %s122 = scalar_lea.vmem %s0, 5
  %s123 = smov 12
  %v124 = vld [vmem:[%s122] ss:$16 sm:%s123]
  %vm125 = vcmask 1043458
  %v126 = vsel %vm125, %v124, %v121
  %s127 = scalar_lea.vmem %s0, 5
  %s128 = smov 48
  %v129 = vld [vmem:[%s127] ss:$16 sm:%s128]
  %vm130 = vcmask 1045508
  %v131 = vsel %vm130, %v129, %v126
  %s132 = scalar_lea.vmem %s0, 5
  %s133 = smov 192
  %v134 = vld [vmem:[%s132] ss:$16 sm:%s133]
  %vm135 = vcmask 1047558
  %v136 = vsel %vm135, %v134, %v131
  %137 = vrot.lane.b32.xlu0 %v136, 80
  %v138 = vpop.permute.xlu0 %137
  %vm139 = vcmask 786048
  %140 = vst.msk [vmem:[%s1] sm:$0xff] %vm139, %v138
  %s141 = scalar_lea.vmem %s0, 13
  %s142 = smov 3
  %v143 = vld [vmem:[%s141] ss:$16 sm:%s142]
  %s144 = scalar_lea.vmem %s0, 13
  %s145 = smov 12
  %v146 = vld [vmem:[%s144] ss:$16 sm:%s145]
  %vm147 = vcmask 1043458
  %v148 = vsel %vm147, %v146, %v143
  %s149 = scalar_lea.vmem %s0, 13
  %s150 = smov 48
  %v151 = vld [vmem:[%s149] ss:$16 sm:%s150]
  %vm152 = vcmask 1045508
  %v153 = vsel %vm152, %v151, %v148
  %s154 = scalar_lea.vmem %s0, 13
  %s155 = smov 192
  %v156 = vld [vmem:[%s154] ss:$16 sm:%s155]
  %vm157 = vcmask 1047558
  %v158 = vsel %vm157, %v156, %v153
  %159 = vrot.lane.b32.xlu0 %v158, 80
  %v160 = vpop.permute.xlu0 %159
  %vm161 = vcmask 786048
  %s162 = scalar_lea.vmem %s1, 8
  %163 = vst.msk [vmem:[%s162] sm:$0xff] %vm161, %v160
  %s164 = scalar_lea.vmem %s0, 4
  %s165 = smov 3
  %v166 = vld [vmem:[%s164] ss:$16 sm:%s165]
  %s167 = scalar_lea.vmem %s0, 4
  %s168 = smov 12
  %v169 = vld [vmem:[%s167] ss:$16 sm:%s168]
  %vm170 = vcmask 1043458
  %v171 = vsel %vm170, %v169, %v166
  %s172 = scalar_lea.vmem %s0, 4
  %s173 = smov 48
  %v174 = vld [vmem:[%s172] ss:$16 sm:%s173]
  %vm175 = vcmask 1045508
  %v176 = vsel %vm175, %v174, %v171
  %s177 = scalar_lea.vmem %s0, 4
  %s178 = smov 192
  %v179 = vld [vmem:[%s177] ss:$16 sm:%s178]
  %vm180 = vcmask 1047558
  %v181 = vsel %vm180, %v179, %v176
  %182 = vrot.lane.b32.xlu0 %v181, 64
  %v183 = vpop.permute.xlu0 %182
  %vm184 = vcmask 654848
  %185 = vst.msk [vmem:[%s1] sm:$0xff] %vm184, %v183
  %s186 = scalar_lea.vmem %s0, 12
  %s187 = smov 3
  %v188 = vld [vmem:[%s186] ss:$16 sm:%s187]
  %s189 = scalar_lea.vmem %s0, 12
  %s190 = smov 12
  %v191 = vld [vmem:[%s189] ss:$16 sm:%s190]
  %vm192 = vcmask 1043458
  %v193 = vsel %vm192, %v191, %v188
  %s194 = scalar_lea.vmem %s0, 12
  %s195 = smov 48
  %v196 = vld [vmem:[%s194] ss:$16 sm:%s195]
  %vm197 = vcmask 1045508
  %v198 = vsel %vm197, %v196, %v193
  %s199 = scalar_lea.vmem %s0, 12
  %s200 = smov 192
  %v201 = vld [vmem:[%s199] ss:$16 sm:%s200]
  %vm202 = vcmask 1047558
  %v203 = vsel %vm202, %v201, %v198
  %204 = vrot.lane.b32.xlu0 %v203, 64
  %v205 = vpop.permute.xlu0 %204
  %vm206 = vcmask 654848
  %s207 = scalar_lea.vmem %s1, 8
  %208 = vst.msk [vmem:[%s207] sm:$0xff] %vm206, %v205
  %s209 = scalar_lea.vmem %s0, 3
  %s210 = smov 3
  %v211 = vld [vmem:[%s209] ss:$16 sm:%s210]
  %s212 = scalar_lea.vmem %s0, 3
  %s213 = smov 12
  %v214 = vld [vmem:[%s212] ss:$16 sm:%s213]
  %vm215 = vcmask 1043458
  %v216 = vsel %vm215, %v214, %v211
  %s217 = scalar_lea.vmem %s0, 3
  %s218 = smov 48
  %v219 = vld [vmem:[%s217] ss:$16 sm:%s218]
  %vm220 = vcmask 1045508
  %v221 = vsel %vm220, %v219, %v216
  %s222 = scalar_lea.vmem %s0, 3
  %s223 = smov 192
  %v224 = vld [vmem:[%s222] ss:$16 sm:%s223]
  %vm225 = vcmask 1047558
  %v226 = vsel %vm225, %v224, %v221
  %227 = vrot.lane.b32.xlu0 %v226, 48
  %v228 = vpop.permute.xlu0 %227
  %vm229 = vcmask 523648
  %230 = vst.msk [vmem:[%s1] sm:$0xff] %vm229, %v228
  %s231 = scalar_lea.vmem %s0, 11
  %s232 = smov 3
  %v233 = vld [vmem:[%s231] ss:$16 sm:%s232]
  %s234 = scalar_lea.vmem %s0, 11
  %s235 = smov 12
  %v236 = vld [vmem:[%s234] ss:$16 sm:%s235]
  %vm237 = vcmask 1043458
  %v238 = vsel %vm237, %v236, %v233
  %s239 = scalar_lea.vmem %s0, 11
  %s240 = smov 48
  %v241 = vld [vmem:[%s239] ss:$16 sm:%s240]
  %vm242 = vcmask 1045508
  %v243 = vsel %vm242, %v241, %v238
  %s244 = scalar_lea.vmem %s0, 11
  %s245 = smov 192
  %v246 = vld [vmem:[%s244] ss:$16 sm:%s245]
  %vm247 = vcmask 1047558
  %v248 = vsel %vm247, %v246, %v243
  %249 = vrot.lane.b32.xlu0 %v248, 48
  %v250 = vpop.permute.xlu0 %249
  %vm251 = vcmask 523648
  %s252 = scalar_lea.vmem %s1, 8
  %253 = vst.msk [vmem:[%s252] sm:$0xff] %vm251, %v250
  %s254 = scalar_lea.vmem %s0, 2
  %s255 = smov 3
  %v256 = vld [vmem:[%s254] ss:$16 sm:%s255]
  %s257 = scalar_lea.vmem %s0, 2
  %s258 = smov 12
  %v259 = vld [vmem:[%s257] ss:$16 sm:%s258]
  %vm260 = vcmask 1043458
  %v261 = vsel %vm260, %v259, %v256
  %s262 = scalar_lea.vmem %s0, 2
  %s263 = smov 48
  %v264 = vld [vmem:[%s262] ss:$16 sm:%s263]
  %vm265 = vcmask 1045508
  %v266 = vsel %vm265, %v264, %v261
  %s267 = scalar_lea.vmem %s0, 2
  %s268 = smov 192
  %v269 = vld [vmem:[%s267] ss:$16 sm:%s268]
  %vm270 = vcmask 1047558
  %v271 = vsel %vm270, %v269, %v266
  %272 = vrot.lane.b32.xlu0 %v271, 32
  %v273 = vpop.permute.xlu0 %272
  %vm274 = vcmask 392448
  %275 = vst.msk [vmem:[%s1] sm:$0xff] %vm274, %v273
  %s276 = scalar_lea.vmem %s0, 10
  %s277 = smov 3
  %v278 = vld [vmem:[%s276] ss:$16 sm:%s277]
  %s279 = scalar_lea.vmem %s0, 10
  %s280 = smov 12
  %v281 = vld [vmem:[%s279] ss:$16 sm:%s280]
  %vm282 = vcmask 1043458
  %v283 = vsel %vm282, %v281, %v278
  %s284 = scalar_lea.vmem %s0, 10
  %s285 = smov 48
  %v286 = vld [vmem:[%s284] ss:$16 sm:%s285]
  %vm287 = vcmask 1045508
  %v288 = vsel %vm287, %v286, %v283
  %s289 = scalar_lea.vmem %s0, 10
  %s290 = smov 192
  %v291 = vld [vmem:[%s289] ss:$16 sm:%s290]
  %vm292 = vcmask 1047558
  %v293 = vsel %vm292, %v291, %v288
  %294 = vrot.lane.b32.xlu0 %v293, 32
  %v295 = vpop.permute.xlu0 %294
  %vm296 = vcmask 392448
  %s297 = scalar_lea.vmem %s1, 8
  %298 = vst.msk [vmem:[%s297] sm:$0xff] %vm296, %v295
  %s299 = scalar_lea.vmem %s0, 1
  %s300 = smov 3
  %v301 = vld [vmem:[%s299] ss:$16 sm:%s300]
  %s302 = scalar_lea.vmem %s0, 1
  %s303 = smov 12
  %v304 = vld [vmem:[%s302] ss:$16 sm:%s303]
  %vm305 = vcmask 1043458
  %v306 = vsel %vm305, %v304, %v301
  %s307 = scalar_lea.vmem %s0, 1
  %s308 = smov 48
  %v309 = vld [vmem:[%s307] ss:$16 sm:%s308]
  %vm310 = vcmask 1045508
  %v311 = vsel %vm310, %v309, %v306
  %s312 = scalar_lea.vmem %s0, 1
  %s313 = smov 192
  %v314 = vld [vmem:[%s312] ss:$16 sm:%s313]
  %vm315 = vcmask 1047558
  %v316 = vsel %vm315, %v314, %v311
  %317 = vrot.lane.b32.xlu0 %v316, 16
  %v318 = vpop.permute.xlu0 %317
  %vm319 = vcmask 261248
  %320 = vst.msk [vmem:[%s1] sm:$0xff] %vm319, %v318
  %s321 = scalar_lea.vmem %s0, 9
  %s322 = smov 3
  %v323 = vld [vmem:[%s321] ss:$16 sm:%s322]
  %s324 = scalar_lea.vmem %s0, 9
  %s325 = smov 12
  %v326 = vld [vmem:[%s324] ss:$16 sm:%s325]
  %vm327 = vcmask 1043458
  %v328 = vsel %vm327, %v326, %v323
  %s329 = scalar_lea.vmem %s0, 9
  %s330 = smov 48
  %v331 = vld [vmem:[%s329] ss:$16 sm:%s330]
  %vm332 = vcmask 1045508
  %v333 = vsel %vm332, %v331, %v328
  %s334 = scalar_lea.vmem %s0, 9
  %s335 = smov 192
  %v336 = vld [vmem:[%s334] ss:$16 sm:%s335]
  %vm337 = vcmask 1047558
  %v338 = vsel %vm337, %v336, %v333
  %339 = vrot.lane.b32.xlu0 %v338, 16
  %v340 = vpop.permute.xlu0 %339
  %vm341 = vcmask 261248
  %s342 = scalar_lea.vmem %s1, 8
  %343 = vst.msk [vmem:[%s342] sm:$0xff] %vm341, %v340

// kernel: encoder_forward.1
$region0: #{encoder_forward.1}
  #allocation0 [shape = 'u32[]', space=smem, size = 0x4, offset = 0x4, fixed_abs, tag = 'smem constant byte address 0x4 - core index']
  #allocation1 [shape = 'u32[72,128]{1,0:T(1,128)}', space=vmem, size = 0x9000, scoped, tag = 'internal scratch']
  %s0 = inlined_call_operand.vmem [shape: f32[8,256], index: 0, kind: input, shape index: {}]
  %s1 = inlined_call_operand.vmem [shape: f32[15,256], index: 1, kind: input, shape index: {}]
  %s2 = inlined_call_operand.vmem [shape: f32[256,32], index: 2, kind: input, shape index: {}]
  %s3 = inlined_call_operand.vmem [shape: f32[1,32], index: 3, kind: input, shape index: {}]
  %s4 = inlined_call_operand.vmem [shape: f32[1,32], index: 4, kind: input, shape index: {}]
  %s5 = inlined_call_operand.hbm [shape: f32[8,32], index: 5, kind: output, shape index: {}]
  %s6 = sld [smem:[#allocation0]]
  $region30: #{encoder_forward.1} parent=0
    _
  %s8 = ssub.s32 1, %s6
  %s9 = scalar_select 0, %s8, %s6
  $region1: #{encoder_forward.1} parent=0
    #allocation2 [shape = 'u8[4096]{0}', space=vmem, size = 0x1000, scoped, tag = 'output window, operand 0, single buffered']
    #allocation3 [shape = 's32[1]{0}', space=sflag, size = 0x4, scoped, tag = 'scoped memory for encoder_forward.1']
    %10 = vsyncpa [#allocation3], 0
    // Predicated region
    $region2: #{encoder_forward.1} parent=1 // pred_check
      _
    $region3: #{encoder_forward.1} parent=1 // pred_check_branch
      %12 = sbr.rel (0) target = $region5
    $region4: #{encoder_forward.1} parent=1 // pred_region
      _
    $region5: #{encoder_forward.1} parent=1 // pred_fallthru
      _
    // Predicated region
    $region6: #{encoder_forward.1} parent=1 // pred_check
      _
    $region7: #{encoder_forward.1} parent=1 // pred_check_branch
      %14 = sbr.rel (0) target = $region9
    $region8: #{encoder_forward.1} parent=1 // pred_region
      _
    $region9: #{encoder_forward.1} parent=1 // pred_fallthru
      _
    // Predicated region
    $region10: #{encoder_forward.1} parent=1 // pred_check
      _
    $region11: #{encoder_forward.1} parent=1 // pred_check_branch
      %16 = sbr.rel (0) target = $region13
    $region12: #{encoder_forward.1} parent=1 // pred_region
      _
    $region13: #{encoder_forward.1} parent=1 // pred_fallthru
      _
    // Predicated region
    $region14: #{encoder_forward.1} parent=1 // pred_check
      _
    $region15: #{encoder_forward.1} parent=1 // pred_check_branch
      %18 = sbr.rel (0) target = $region17
    $region16: #{encoder_forward.1} parent=1 // pred_region
      _
    $region17: #{encoder_forward.1} parent=1 // pred_fallthru
      _
    // Predicated region
    $region18: #{encoder_forward.1} parent=1 // pred_check
      _
    $region19: #{encoder_forward.1} parent=1 // pred_check_branch
      %20 = sbr.rel (0) target = $region21
    $region20: #{encoder_forward.1} parent=1 // pred_region
      _
    $region21: #{encoder_forward.1} parent=1 // pred_fallthru
      _
    %v21 = vld [vmem:[%s0] sm:$0xff]
    %v22 = vld [vmem:[%s0 + $0x8] sm:$0xff]
    %v23 = vld [vmem:[%s1] ss:$8 sm:$0x3]
    %v25 = vperm.slane %v23, 0
    %v26 = vperm.slane %v23, 1
    %vm29 = vcmp.ge.f32.partialorder %v21, %v25
    %vm30 = vcmp.ge.f32.partialorder %v22, %v26
    %s31 = scalar_lea.vmem %s1, 1
    %v32 = vld [vmem:[%s31] ss:$8 sm:$0x3]
    %v34 = vperm.slane %v32, 0
    %v35 = vperm.slane %v32, 1
    %vm38 = vcmp.lt.f32.partialorder %v21, %v34
    %vm39 = vcmp.lt.f32.partialorder %v22, %v35
    %vm40 = vmand %vm29, %vm38
    %vm41 = vmand %vm30, %vm39
    %v42 = vsel %vm40, 1.0, 0.0
    %v43 = vsel %vm41, 1.0, 0.0
    %s44 = scalar_lea.vmem %s1, 2
    %v45 = vld [vmem:[%s44] ss:$8 sm:$0x3]
    %s46 = scalar_lea.vmem %s1, 3
    %v47 = vld [vmem:[%s46] ss:$8 sm:$0x3]
    %s48 = scalar_lea.vmem %s1, 4
    %v49 = vld [vmem:[%s48] ss:$8 sm:$0x3]
    %s50 = scalar_lea.vmem %s1, 5
    %v51 = vld [vmem:[%s50] ss:$8 sm:$0x3]
    %52 = vrot.lane.b32.xlu0 %v42, 112
    %v53 = vpop.permute.xlu0 %52
    %54 = vrot.lane.b32.xlu0 %v43, 112
    %v55 = vpop.permute.xlu0 %54
    %v56 = vlaneseq
    %v57 = vand.u32 %v56, 127
    %vm58 = vcmp.lt.s32.totalorder %v57, 112
    %v59 = vsel %vm58, %v53, %v55
    %v60 = vsel %vm58, %v55, %v53
    %v62 = vperm.slane %v45, 0
    %v63 = vperm.slane %v45, 1
    %v66 = vsub.f32 %v21, %v62
    %v67 = vsub.f32 %v22, %v63
    %v69 = vperm.slane %v47, 0
    %v70 = vperm.slane %v47, 1
    %v73 = vmul.f32 %v66, %v69
    %v74 = vmul.f32 %v67, %v70
    %v75 = vmul.f32 %v73, %v42
    %v76 = vmul.f32 %v74, %v43
    %v78 = vperm.slane %v49, 0
    %v79 = vperm.slane %v49, 1
    %v82 = vsub.f32 %v78, %v21
    %v83 = vsub.f32 %v79, %v22
    %v85 = vperm.slane %v51, 0
    %v86 = vperm.slane %v51, 1
    %v89 = vmul.f32 %v82, %v85
    %v90 = vmul.f32 %v83, %v86
    %v91 = vmul.f32 %v89, %v59
    %v92 = vmul.f32 %v90, %v60
    %v93 = vadd.f32 %v75, %v91
    %v94 = vadd.f32 %v76, %v92
    %s95 = scalar_lea.vmem %s1, 6
    %v96 = vld [vmem:[%s95] ss:$8 sm:$0x3]
    %s97 = scalar_lea.vmem %s1, 7
    %v98 = vld [vmem:[%s97] ss:$8 sm:$0x3]
    %s99 = scalar_lea.vmem %s1, 16
    %v100 = vld [vmem:[%s99] ss:$8 sm:$0x3]
    %s101 = scalar_lea.vmem %s1, 17
    %v102 = vld [vmem:[%s101] ss:$8 sm:$0x3]
    %103 = vrot.lane.b32.xlu0 %v93, 112
    %v104 = vpop.permute.xlu0 %103
    %105 = vrot.lane.b32.xlu0 %v94, 112
    %v106 = vpop.permute.xlu0 %105
    %v107 = vsel %vm58, %v104, %v106
    %v108 = vsel %vm58, %v106, %v104
    %v110 = vperm.slane %v96, 0
    %v111 = vperm.slane %v96, 1
    %v114 = vsub.f32 %v21, %v110
    %v115 = vsub.f32 %v22, %v111
    %v117 = vperm.slane %v98, 0
    %v118 = vperm.slane %v98, 1
    %v121 = vmul.f32 %v114, %v117
    %v122 = vmul.f32 %v115, %v118
    %v123 = vmul.f32 %v121, %v93
    %v124 = vmul.f32 %v122, %v94
    %v126 = vperm.slane %v100, 0
    %v127 = vperm.slane %v100, 1
    %v130 = vsub.f32 %v126, %v21
    %v131 = vsub.f32 %v127, %v22
    %v133 = vperm.slane %v102, 0
    %v134 = vperm.slane %v102, 1
    %v137 = vmul.f32 %v130, %v133
    %v138 = vmul.f32 %v131, %v134
    %v139 = vmul.f32 %v137, %v107
    %v140 = vmul.f32 %v138, %v108
    %v141 = vadd.f32 %v123, %v139
    %v142 = vadd.f32 %v124, %v140
    %s143 = scalar_lea.vmem %s1, 18
    %v144 = vld [vmem:[%s143] ss:$8 sm:$0x3]
    %s145 = scalar_lea.vmem %s1, 19
    %v146 = vld [vmem:[%s145] ss:$8 sm:$0x3]
    %s147 = scalar_lea.vmem %s1, 20
    %v148 = vld [vmem:[%s147] ss:$8 sm:$0x3]
    %s149 = scalar_lea.vmem %s1, 21
    %v150 = vld [vmem:[%s149] ss:$8 sm:$0x3]
    %151 = vrot.lane.b32.xlu0 %v141, 112
    %v152 = vpop.permute.xlu0 %151
    %153 = vrot.lane.b32.xlu0 %v142, 112
    %v154 = vpop.permute.xlu0 %153
    %v155 = vsel %vm58, %v152, %v154
    %v156 = vsel %vm58, %v154, %v152
    %v158 = vperm.slane %v144, 0
    %v159 = vperm.slane %v144, 1
    %v162 = vsub.f32 %v21, %v158
    %v163 = vsub.f32 %v22, %v159
    %v165 = vperm.slane %v146, 0
    %v166 = vperm.slane %v146, 1
    %v169 = vmul.f32 %v162, %v165
    %v170 = vmul.f32 %v163, %v166
    %v171 = vmul.f32 %v169, %v141
    %v172 = vmul.f32 %v170, %v142
    %v174 = vperm.slane %v148, 0
    %v175 = vperm.slane %v148, 1
    %v178 = vsub.f32 %v174, %v21
    %v179 = vsub.f32 %v175, %v22
    %v181 = vperm.slane %v150, 0
    %v182 = vperm.slane %v150, 1
    %v185 = vmul.f32 %v178, %v181
    %v186 = vmul.f32 %v179, %v182
    %v187 = vmul.f32 %v185, %v155
    %v188 = vmul.f32 %v186, %v156
    %v189 = vadd.f32 %v171, %v187
    %v190 = vadd.f32 %v172, %v188
    %v191 = vxor.u32 %v21, 2147483648
    %v192 = vxor.u32 %v22, 2147483648
    %v193 = vmul.f32 %v191, 1.442695
    %v194 = vpow.pop %v193
    %v195 = vmul.f32 %v192, 1.442695
    %v196 = vpow.pop %v195
    %v197 = vadd.f32 %v194, 1.0
    %v198 = vadd.f32 %v196, 1.0
    %v199 = vrcp.pop %v197
    %v200 = vmul.f32 %v197, %v199
    %v201 = vsub.f32 1.0, %v200
    %v202 = vmul.f32 %v199, %v201
    %v203 = vadd.f32 %v199, %v202
    %vm204 = vweird.f32 %v197
    %vm205 = vweird.f32 %v199
    %vm206 = vmor %vm204, %vm205
    %v207 = vsel %vm206, %v199, %v203
    %v208 = vand.u32 2147483647, %v197
    %vm209 = vcmp.eq.f32.partialorder %v208, 8.507059e+37
    %v210 = vand.u32 %v197, 2147483648
    %v211 = vor.u32 1.1754944e-38, %v210
    %v212 = vsel %vm209, %v211, %v207
    %v213 = vmul.f32 1.0, %v212
    %v214 = vrcp.pop %v198
    %v215 = vmul.f32 %v198, %v214
    %v216 = vsub.f32 1.0, %v215
    %v217 = vmul.f32 %v214, %v216
    %v218 = vadd.f32 %v214, %v217
    %vm219 = vweird.f32 %v198
    %vm220 = vweird.f32 %v214
    %vm221 = vmor %vm219, %vm220
    %v222 = vsel %vm221, %v214, %v218
    %v223 = vand.u32 2147483647, %v198
    %vm224 = vcmp.eq.f32.partialorder %v223, 8.507059e+37
    %v225 = vand.u32 %v198, 2147483648
    %v226 = vor.u32 1.1754944e-38, %v225
    %v227 = vsel %vm224, %v226, %v222
    %v228 = vmul.f32 1.0, %v227
    %v229 = vmul.f32 %v21, %v213
    %v230 = vmul.f32 %v22, %v228
    %s231 = scalar_lea.vmem %s1, 22
    %v232 = vld [vmem:[%s231] ss:$8 sm:$0x3]
    %vm233 = vcmp.eq.f32.partialorder %v232, 1.0
    %v234 = vsel %vm233, 1, 0
    %v235 = vperm.slane %v234, 0
    %v236 = vperm.slane %v234, 1
    %vm237 = vcmp.eq.s32.totalorder %v235, 1
    %vm238 = vcmp.eq.s32.totalorder %v236, 1
    %v239 = vsel %vm237, %v229, %v189
    %v240 = vsel %vm238, %v230, %v190
    %v241 = vld [vmem:[%s2] sm:$0xff]
    %v242 = vld [vmem:[%s2 + $0x8] sm:$0xff]
    %v243 = vld [vmem:[%s2 + $0x10] sm:$0xff]
    %v244 = vld [vmem:[%s2 + $0x18] sm:$0xff]
    %v245 = vld [vmem:[%s2 + $0x20] sm:$0xff]
    %v246 = vld [vmem:[%s2 + $0x28] sm:$0xff]
    %v247 = vld [vmem:[%s2 + $0x30] sm:$0xff]
    %v248 = vld [vmem:[%s2 + $0x38] sm:$0xff]
    %v249 = vld [vmem:[%s2 + $0x40] sm:$0xff]
    %v250 = vld [vmem:[%s2 + $0x48] sm:$0xff]
    %v251 = vld [vmem:[%s2 + $0x50] sm:$0xff]
    %v252 = vld [vmem:[%s2 + $0x58] sm:$0xff]
    %v253 = vld [vmem:[%s2 + $0x60] sm:$0xff]
    %v254 = vld [vmem:[%s2 + $0x68] sm:$0xff]
    %v255 = vld [vmem:[%s2 + $0x70] sm:$0xff]
    %v256 = vld [vmem:[%s2 + $0x78] sm:$0xff]
    %v257 = vld [vmem:[%s2 + $0x80] sm:$0xff]
    %v258 = vld [vmem:[%s2 + $0x88] sm:$0xff]
    %v259 = vld [vmem:[%s2 + $0x90] sm:$0xff]
    %v260 = vld [vmem:[%s2 + $0x98] sm:$0xff]
    %v261 = vld [vmem:[%s2 + $0xa0] sm:$0xff]
    %v262 = vld [vmem:[%s2 + $0xa8] sm:$0xff]
    %v263 = vld [vmem:[%s2 + $0xb0] sm:$0xff]
    %v264 = vld [vmem:[%s2 + $0xb8] sm:$0xff]
    %v265 = vld [vmem:[%s2 + $0xc0] sm:$0xff]
    %v266 = vld [vmem:[%s2 + $0xc8] sm:$0xff]
    %v267 = vld [vmem:[%s2 + $0xd0] sm:$0xff]
    %v268 = vld [vmem:[%s2 + $0xd8] sm:$0xff]
    %v269 = vld [vmem:[%s2 + $0xe0] sm:$0xff]
    %v270 = vld [vmem:[%s2 + $0xe8] sm:$0xff]
    %v271 = vld [vmem:[%s2 + $0xf0] sm:$0xff]
    %v272 = vld [vmem:[%s2 + $0xf8] sm:$0xff]
    %273 = vmatpush.msra.mxu0 %v256
    %274 = vmatpush.msra.mxu0 %v255
    %275 = vmatpush.msra.mxu0 %v254
    %276 = vmatpush.msra.mxu0 %v253
    %277 = vmatpush.msra.mxu0 %v252
    %278 = vmatpush.msra.mxu0 %v251
    %279 = vmatpush.msra.mxu0 %v250
    %280 = vmatpush.msra.mxu0 %v249
    %281 = vmatpush.msra.mxu0 %v248
    %282 = vmatpush.msra.mxu0 %v247
    %283 = vmatpush.msra.mxu0 %v246
    %284 = vmatpush.msra.mxu0 %v245
    %285 = vmatpush.msra.mxu0 %v244
    %286 = vmatpush.msra.mxu0 %v243
    %287 = vmatpush.msra.mxu0 %v242
    %288 = vmatpush.msra.mxu0 %v241
    %289 = vmatmul.f32.gmra.mxu0 %v239
    %v290 = vpop.f32.mrf.mxu0
    %v291 = vadd.f32 0.0, %v290
    %292 = vdwg.mxu0
    %293 = vmatpush.msra.mxu0 %v272
    %294 = vmatpush.msra.mxu0 %v271
    %295 = vmatpush.msra.mxu0 %v270
    %296 = vmatpush.msra.mxu0 %v269
    %297 = vmatpush.msra.mxu0 %v268
    %298 = vmatpush.msra.mxu0 %v267
    %299 = vmatpush.msra.mxu0 %v266
    %300 = vmatpush.msra.mxu0 %v265
    %301 = vmatpush.msra.mxu0 %v264
    %302 = vmatpush.msra.mxu0 %v263
    %303 = vmatpush.msra.mxu0 %v262
    %304 = vmatpush.msra.mxu0 %v261
    %305 = vmatpush.msra.mxu0 %v260
    %306 = vmatpush.msra.mxu0 %v259
    %307 = vmatpush.msra.mxu0 %v258
    %308 = vmatpush.msra.mxu0 %v257
    %309 = vmatmul.f32.gmra.mxu0 %v240
    %v310 = vpop.f32.mrf.mxu0
    %v311 = vadd.f32 %v291, %v310
    %312 = vdwg.mxu0
    %vm313 = vcmask 261120
    %v314 = vsel %vm313, %v311, 0.0
    %v315 = vrot.slane %v314, 4
    %v316 = vadd.f32 %v314, %v315
    %v317 = vrot.slane %v316, 2
    %v318 = vadd.f32 %v316, %v317
    %v319 = vrot.slane %v318, 1
    %v320 = vadd.f32 %v318, %v319
    %v321 = vrcp.pop 8.0
    %v322 = vmul.f32 8.0, %v321
    %v323 = vsub.f32 1.0, %v322
    %v324 = vmul.f32 %v321, %v323
    %v325 = vadd.f32 %v321, %v324
    %vm326 = vweird.f32 %v321
    %v327 = vsel %vm326, %v321, %v325
    %v328 = vmul.f32 %v320, %v327
    %v329 = vsub.f32 %v311, %v328
    %v330 = vmul.f32 %v329, %v329
    %v331 = vsel %vm313, %v330, 0.0
    %v332 = vrot.slane %v331, 4
    %v333 = vadd.f32 %v331, %v332
    %v334 = vrot.slane %v333, 2
    %v335 = vadd.f32 %v333, %v334
    %v336 = vrot.slane %v335, 1
    %v337 = vadd.f32 %v335, %v336
    %v338 = vmul.f32 %v337, %v327
    %v339 = vadd.f32 %v338, 1e-05
    %v340 = vrsqrt.pop %v339
    %v341 = vmul.f32 %v340, %v339
    %v342 = vmul.f32 %v341, %v340
    %v343 = vmul.f32 0.5, %v342
    %v344 = vsub.f32 1.5, %v343
    %v345 = vmul.f32 %v340, %v344
    %vm346 = vweird.f32 %v339
    %vm347 = vweird.f32 %v340
    %vm348 = vmor %vm346, %vm347
    %v349 = vsel %vm348, %v340, %v345
    %v350 = vmul.f32 %v329, %v349
    %v351 = vld [vmem:[%s3] sm:$0x1]
    %v353 = vperm.slane %v351, 0
    %v355 = vmul.f32 %v350, %v353
    %v356 = vld [vmem:[%s4] sm:$0x1]
    %v358 = vperm.slane %v356, 0
    %v360 = vadd.f32 %v355, %v358
    %361 = vst.msk [vmem:[#allocation2] sm:$0xff] %vm313, %v360
    // Predicated region
    $region22: #{encoder_forward.1} parent=1 // pred_check
      _
    $region23: #{encoder_forward.1} parent=1 // pred_check_branch
      %363 = sbr.rel (0) target = $region25
    $region24: #{encoder_forward.1} parent=1 // pred_region
      %365 = vsyncadd [#allocation3], 0
      %s367 = sshll.u32 [#allocation2], 4
      %s368 = int_to_ptr.vmem [resolvable:$true] %s367
      %s369 = sshll.u32 %s5, 4
      %s370 = int_to_ptr.hbm [resolvable:$true] %s369
      %372 = dma.vmem_to_hbm [thread:$0]  %s368, 128, %s370, [#allocation3]
    $region25: #{encoder_forward.1} parent=1 // pred_fallthru
      _
    // Predicated region
    $region26: #{encoder_forward.1} parent=1 // pred_check
      _
    $region27: #{encoder_forward.1} parent=1 // pred_check_branch
      %374 = sbr.rel (0) target = $region29
    $region28: #{encoder_forward.1} parent=1 // pred_region
      %376 = dma.done [#allocation3], 128
    $region29: #{encoder_forward.1} parent=1 // pred_fallthru
      _
    %377 = vsyncpa [#allocation3], 1

</llo_original>
